<compile_context>
chip_gen: v7x
topology: tpu7x:2x2x1
jax: 0.10.0
libtpu: 0.0.40
codegen_flags: <defaults>
</compile_context>

<pallas_src>
import jax
import jax.numpy as jnp
from jax.experimental import pallas as pl
from jax.experimental.pallas import tpu as pltpu  # noqa: F401  (TPU backend)

EPS = 1e-5


def _fused_kernel(x_ref, w_ref, g_ref, b_ref, o_ref):
    # x_ref: (N, Cin) f32
    # w_ref: (Cin, Cout) f32
    # g_ref: (1, Cout) f32  (BN gamma)
    # b_ref: (1, Cout) f32  (BN beta)
    # o_ref: (N, Cout) f32

    # Linear (bias intentionally omitted: it cancels exactly under
    # training-mode batch norm). Single MXU dot; the vector-extended slot is
    # otherwise idle in this kernel.
    y = jnp.dot(x_ref[...], w_ref[...], preferred_element_type=jnp.float32)

    # BatchNorm (training mode), one-pass statistics: the two reductions are
    # independent (no serial dependency through the mean).
    n = y.shape[0]
    inv_n = 1.0 / n
    sum_y = jnp.sum(y, axis=0, keepdims=True)
    sum_y2 = jnp.sum(y * y, axis=0, keepdims=True)
    mean = sum_y * inv_n
    # Clamp: E[y^2] - E[y]^2 can go slightly negative from cancellation.
    var = jnp.maximum(sum_y2 * inv_n - mean * mean, 0.0)

    # Fold affine: out = y * scale + shift, rsqrt on the EUP.
    scale = g_ref[...] * jax.lax.rsqrt(var + EPS)
    shift = b_ref[...] - mean * scale

    o_ref[...] = jnp.maximum(y * scale + shift, 0.0)


def model_forward(x, w, b, gamma, beta):
    """x: (N, Cin) f32; w: (Cin, Cout); b/gamma/beta: (Cout,).

    `b` is accepted for interface parity with the PyTorch module but is not
    used by the kernel: a constant per-channel bias added before training-mode
    batch norm has exactly zero effect on the output.
    """
    del b
    n, cin = x.shape
    cout = w.shape[1]

    # Reshapes of contiguous arrays are metadata-only (no HBM round trip).
    g2 = gamma.reshape(1, cout)
    bt2 = beta.reshape(1, cout)

    full = lambda shape: pl.BlockSpec(shape, lambda: (0,) * len(shape))

    cost = pl.CostEstimate(
        flops=2 * n * cin * cout + 10 * n * cout,
        transcendentals=cout,
        bytes_accessed=(n * cin + cin * cout + 2 * cout + n * cout) * 4,
    )

    return pl.pallas_call(
        _fused_kernel,
        out_shape=jax.ShapeDtypeStruct((n, cout), jnp.float32),
        grid=(),
        in_specs=[
            full((n, cin)),
            full((cin, cout)),
            full((1, cout)),
            full((1, cout)),
        ],
        out_specs=full((n, cout)),
        cost_estimate=cost,
    )(x, w, g2, bt2)


def reference_forward(x, w, b, gamma, beta):
    # Reference keeps the Linear bias; the allclose check below numerically
    # confirms that it cancels under training-mode batch norm.
    y = x @ w + b
    mean = y.mean(axis=0, keepdims=True)
    var = ((y - mean) ** 2).mean(axis=0, keepdims=True)
    z = (y - mean) / jnp.sqrt(var + EPS) * gamma + beta
    return jnp.maximum(z, 0.0)


if __name__ == "__main__":
    key = jax.random.PRNGKey(0)
    kx, kw, kb = jax.random.split(key, 3)

    N, CIN, COUT = 20, 3, 5

    x1 = jax.random.normal(kx, (N, CIN), dtype=jnp.float32)

    # Deterministic parameter init (Linear weight/bias; BN gamma=1, beta=0).
    bound = 1.0 / jnp.sqrt(CIN)
    w = jax.random.uniform(kw, (CIN, COUT), minval=-bound, maxval=bound,
                           dtype=jnp.float32)
    b = jax.random.uniform(kb, (COUT,), minval=-bound, maxval=bound,
                           dtype=jnp.float32)
    gamma = jnp.ones((COUT,), dtype=jnp.float32)
    beta = jnp.zeros((COUT,), dtype=jnp.float32)

    out = model_forward(x1, w, b, gamma, beta)
    out = jax.block_until_ready(out)

    ref = reference_forward(x1, w, b, gamma, beta)
    assert out.shape == (N, COUT)
    assert jnp.allclose(out, ref, atol=1e-4, rtol=1e-4)

    print("KERNEL_OK")
</pallas_src>

<mosaic_0001>
module attributes {stable_mosaic.version = 11 : i64} {
  func.func @_fused_kernel(%arg0: memref<20x3xf32, #tpu.memory_space<vmem>>, %arg1: memref<3x5xf32, #tpu.memory_space<vmem>>, %arg2: memref<1x5xf32, #tpu.memory_space<vmem>>, %arg3: memref<1x5xf32, #tpu.memory_space<vmem>>, %arg4: memref<20x5xf32, #tpu.memory_space<vmem>>) attributes {dimension_semantics = [], scalar_prefetch = 0 : i64, scratch_operands = 0 : i64, tpu.core_type = #tpu.core_type<tc>} {
    %c0 = arith.constant 0 : index
    %c0_0 = arith.constant 0 : index
    %0 = vector.load %arg0[%c0, %c0_0] : memref<20x3xf32, #tpu.memory_space<vmem>>, vector<20x3xf32>
    %c0_1 = arith.constant 0 : index
    %c0_2 = arith.constant 0 : index
    %1 = vector.load %arg1[%c0_1, %c0_2] : memref<3x5xf32, #tpu.memory_space<vmem>>, vector<3x5xf32>
    %cst = arith.constant dense<0.000000e+00> : vector<20x5xf32>
    %2 = tpu.matmul %0, %1, %cst {dimension_numbers = #tpu.dot_dimension_numbers<[1], [0], [0], [1], [0, 0, 1, 1], [], []>} : vector<20x3xf32>, vector<3x5xf32>, vector<20x5xf32> -> vector<20x5xf32>
    %cst_3 = arith.constant dense<0.000000e+00> : vector<5xf32>
    %3 = vector.multi_reduction <add>, %2, %cst_3 [0] : vector<20x5xf32> to vector<5xf32>
    %4 = vector.shape_cast %3 : vector<5xf32> to vector<1x5xf32>
    %5 = arith.mulf %2, %2 : vector<20x5xf32>
    %cst_4 = arith.constant dense<0.000000e+00> : vector<5xf32>
    %6 = vector.multi_reduction <add>, %5, %cst_4 [0] : vector<20x5xf32> to vector<5xf32>
    %7 = vector.shape_cast %6 : vector<5xf32> to vector<1x5xf32>
    %cst_5 = arith.constant 5.000000e-02 : f32
    %8 = vector.broadcast %cst_5 : f32 to vector<1x5xf32>
    %9 = arith.mulf %4, %8 : vector<1x5xf32>
    %cst_6 = arith.constant 5.000000e-02 : f32
    %10 = vector.broadcast %cst_6 : f32 to vector<1x5xf32>
    %11 = arith.mulf %7, %10 : vector<1x5xf32>
    %12 = arith.mulf %9, %9 : vector<1x5xf32>
    %13 = arith.subf %11, %12 : vector<1x5xf32>
    %cst_7 = arith.constant 0.000000e+00 : f32
    %14 = vector.broadcast %cst_7 : f32 to vector<1x5xf32>
    %15 = arith.maximumf %13, %14 : vector<1x5xf32>
    %c0_8 = arith.constant 0 : index
    %c0_9 = arith.constant 0 : index
    %16 = vector.load %arg2[%c0_8, %c0_9] : memref<1x5xf32, #tpu.memory_space<vmem>>, vector<1x5xf32>
    %cst_10 = arith.constant 9.99999974E-6 : f32
    %17 = vector.broadcast %cst_10 : f32 to vector<1x5xf32>
    %18 = arith.addf %15, %17 : vector<1x5xf32>
    %19 = math.rsqrt %18 : vector<1x5xf32>
    %20 = arith.mulf %16, %19 : vector<1x5xf32>
    %c0_11 = arith.constant 0 : index
    %c0_12 = arith.constant 0 : index
    %21 = vector.load %arg3[%c0_11, %c0_12] : memref<1x5xf32, #tpu.memory_space<vmem>>, vector<1x5xf32>
    %22 = arith.mulf %9, %20 : vector<1x5xf32>
    %23 = arith.subf %21, %22 : vector<1x5xf32>
    %24 = vector.broadcast %20 : vector<1x5xf32> to vector<20x5xf32>
    %25 = arith.mulf %2, %24 : vector<20x5xf32>
    %26 = vector.broadcast %23 : vector<1x5xf32> to vector<20x5xf32>
    %27 = arith.addf %25, %26 : vector<20x5xf32>
    %cst_13 = arith.constant 0.000000e+00 : f32
    %28 = vector.broadcast %cst_13 : f32 to vector<20x5xf32>
    %29 = arith.maximumf %27, %28 : vector<20x5xf32>
    %c0_14 = arith.constant 0 : index
    %c0_15 = arith.constant 0 : index
    %30 = vector.load %arg4[%c0_14, %c0_15] : memref<20x5xf32, #tpu.memory_space<vmem>>, vector<20x5xf32>
    tpu.vector_store %arg4[%c0_14, %c0_15], %29 {strides = array<i32>} : memref<20x5xf32, #tpu.memory_space<vmem>>, vector<20x5xf32>,
    return
  }
}

</mosaic_0001>

<llo_original>
// kernel: tpu_custom_call.1
$region0: #{tpu_custom_call.1}
  #allocation0 [shape = 'u32[]', space=smem, size = 0x4, offset = 0x4, fixed_abs, tag = 'smem constant byte address 0x4 - core index']
  #allocation1 [shape = 'u32[144,128]{1,0:T(1,128)}', space=vmem, size = 0x12000, scoped, tag = 'internal scratch']
  %s0 = inlined_call_operand.vmem [shape: f32[20,3], index: 0, kind: input, shape index: {}]
  %s1 = inlined_call_operand.vmem [shape: f32[3,5], index: 1, kind: input, shape index: {}]
  %s2 = inlined_call_operand.vmem [shape: f32[1,5], index: 2, kind: input, shape index: {}]
  %s3 = inlined_call_operand.vmem [shape: f32[1,5], index: 3, kind: input, shape index: {}]
  %s4 = inlined_call_operand.vmem [shape: f32[20,5], index: 4, kind: output, shape index: {}]
  %s5 = sld [smem:[#allocation0]]
  $region26: #{tpu_custom_call.1} parent=0
    _
  %s7 = ssub.s32 1, %s5
  %s8 = scalar_select 0, %s7, %s5
  // Predicated region
  $region2: #{tpu_custom_call.1} parent=0 // pred_check
    _
  $region3: #{tpu_custom_call.1} parent=0 // pred_check_branch
    %10 = sbr.rel (0) target = $region5
  $region4: #{tpu_custom_call.1} parent=0 // pred_region
    _
  $region5: #{tpu_custom_call.1} parent=0 // pred_fallthru
    _
  // Predicated region
  $region6: #{tpu_custom_call.1} parent=0 // pred_check
    _
  $region7: #{tpu_custom_call.1} parent=0 // pred_check_branch
    %12 = sbr.rel (0) target = $region9
  $region8: #{tpu_custom_call.1} parent=0 // pred_region
    _
  $region9: #{tpu_custom_call.1} parent=0 // pred_fallthru
    _
  // Predicated region
  $region10: #{tpu_custom_call.1} parent=0 // pred_check
    _
  $region11: #{tpu_custom_call.1} parent=0 // pred_check_branch
    %14 = sbr.rel (0) target = $region13
  $region12: #{tpu_custom_call.1} parent=0 // pred_region
    _
  $region13: #{tpu_custom_call.1} parent=0 // pred_fallthru
    _
  // Predicated region
  $region14: #{tpu_custom_call.1} parent=0 // pred_check
    _
  $region15: #{tpu_custom_call.1} parent=0 // pred_check_branch
    %16 = sbr.rel (0) target = $region17
  $region16: #{tpu_custom_call.1} parent=0 // pred_region
    _
  $region17: #{tpu_custom_call.1} parent=0 // pred_fallthru
    _
  %v17 = vld [vmem:[%s0] sm:$0xff]
  %v18 = vld [vmem:[%s0 + $0x8] sm:$0xff]
  %v19 = vld [vmem:[%s0 + $0x10] sm:$0xf]
  %v20 = vld [vmem:[%s1] sm:$0x7]
  %vm21 = vcmask 23552
  %v23 = vsel %vm21, %v17, 0
  %v26 = vsel %vm21, %v18, 0
  %v29 = vsel %vm21, %v19, 0
  %vm31 = vcmask 1042432
  %v33 = vsel %vm31, %v20, 0
  %35 = vmatprep.subr.mxu0 0.0
  %36 = vmatpush1.msra.mxu0 %v33
  %37 = vmatprep.subr.mxu0 0.0
  %38 = vmatpush1.msra.mxu0 0.0
  %39 = vmatprep.subr.mxu0 0.0
  %40 = vmatpush1.msra.mxu0 0.0
  %41 = vmatprep.subr.mxu0 0.0
  %42 = vmatpush1.msra.mxu0 0.0
  %43 = vmatprep.subr.mxu0 0.0
  %44 = vmatpush1.msra.mxu0 0.0
  %45 = vmatprep.subr.mxu0 0.0
  %46 = vmatpush1.msra.mxu0 0.0
  %47 = vmatprep.subr.mxu0 0.0
  %48 = vmatpush1.msra.mxu0 0.0
  %49 = vmatprep.subr.mxu0 0.0
  %50 = vmatpush1.msra.mxu0 0.0
  %51 = vmatprep.subr.mxu0 0.0
  %52 = vmatpush1.msra.mxu0 0.0
  %53 = vmatprep.subr.mxu0 0.0
  %54 = vmatpush1.msra.mxu0 0.0
  %55 = vmatprep.subr.mxu0 0.0
  %56 = vmatpush1.msra.mxu0 0.0
  %57 = vmatprep.subr.mxu0 0.0
  %58 = vmatpush1.msra.mxu0 0.0
  %59 = vmatprep.subr.mxu0 0.0
  %60 = vmatpush1.msra.mxu0 0.0
  %61 = vmatprep.subr.mxu0 0.0
  %62 = vmatpush1.msra.mxu0 0.0
  %63 = vmatprep.subr.mxu0 0.0
  %64 = vmatpush1.msra.mxu0 0.0
  %65 = vmatprep.subr.mxu0 0.0
  %66 = vmatpush1.msra.mxu0 0.0
  %67 = vmatprep.subr.mxu0 0.0
  %68 = vmatpush1.msra.mxu0 0.0
  %69 = vmatprep.subr.mxu0 0.0
  %70 = vmatpush1.msra.mxu0 0.0
  %71 = vmatprep.subr.mxu0 0.0
  %72 = vmatpush1.msra.mxu0 0.0
  %73 = vmatprep.subr.mxu0 0.0
  %74 = vmatpush1.msra.mxu0 0.0
  %75 = vmatprep.subr.mxu0 0.0
  %76 = vmatpush1.msra.mxu0 0.0
  %77 = vmatprep.subr.mxu0 0.0
  %78 = vmatpush1.msra.mxu0 0.0
  %79 = vmatprep.subr.mxu0 0.0
  %80 = vmatpush1.msra.mxu0 0.0
  %81 = vmatprep.subr.mxu0 0.0
  %82 = vmatpush1.msra.mxu0 0.0
  %83 = vmatprep.subr.mxu0 0.0
  %84 = vmatpush1.msra.mxu0 0.0
  %85 = vmatprep.subr.mxu0 0.0
  %86 = vmatpush1.msra.mxu0 0.0
  %87 = vmatprep.subr.mxu0 0.0
  %88 = vmatpush1.msra.mxu0 0.0
  %89 = vmatprep.subr.mxu0 0.0
  %90 = vmatpush1.msra.mxu0 0.0
  %91 = vmatprep.subr.mxu0 0.0
  %92 = vmatpush1.msra.mxu0 0.0
  %93 = vmatprep.subr.mxu0 0.0
  %94 = vmatpush1.msra.mxu0 0.0
  %95 = vmatprep.subr.mxu0 0.0
  %96 = vmatpush1.msra.mxu0 0.0
  %97 = vmatprep.subr.mxu0 0.0
  %98 = vmatpush1.msra.mxu0 0.0
  %99 = vmatprep.mubr.f32.mxu0 0.0
  %100 = vmatmul.mubr.f32.gmra.mrb[0].mxu0 %v23
  %v101 = vpop.f32.mrb[0].mxu0
  %v102 = vadd.f32 0.0, %v101
  %v103 = vpop.f32.mrb[0].mxu0
  %104 = vmatprep.mubr.f32.mxu0 0.0
  %105 = vmatmul.mubr.f32.gmra.mrb[0].mxu0 %v26
  %v106 = vpop.f32.mrb[0].mxu0
  %v107 = vadd.f32 0.0, %v106
  %v108 = vpop.f32.mrb[0].mxu0
  %109 = vmatprep.mubr.f32.mxu0 0.0
  %110 = vmatmul.mubr.f32.gmra.mrb[0].mxu0 %v29
  %v111 = vpop.f32.mrb[0].mxu0
  %v112 = vadd.f32 0.0, %v111
  %v113 = vpop.f32.mrb[0].mxu0
  %114 = vdwg.mxu0
  %vm115 = vcmask 39936
  %v116 = vsel %vm115, %v102, 0.0
  %v117 = vsel %vm115, %v107, 0.0
  %v118 = vadd.f32 %v116, %v117
  %vm119 = vcmask 35840
  %v120 = vsel %vm119, %v112, 0.0
  %v121 = vadd.f32 %v118, %v120
  %v122 = vrot.slane %v121, 4
  %v123 = vadd.f32 %v121, %v122
  %v124 = vrot.slane %v123, 2
  %v125 = vadd.f32 %v123, %v124
  %v126 = vrot.slane %v125, 1
  %v127 = vadd.f32 %v125, %v126
  %v128 = vmul.f32 %v102, %v102
  %v129 = vmul.f32 %v107, %v107
  %v130 = vmul.f32 %v112, %v112
  %v131 = vsel %vm115, %v128, 0.0
  %v132 = vsel %vm115, %v129, 0.0
  %v133 = vadd.f32 %v131, %v132
  %v134 = vsel %vm119, %v130, 0.0
  %v135 = vadd.f32 %v133, %v134
  %v136 = vrot.slane %v135, 4
  %v137 = vadd.f32 %v135, %v136
  %v138 = vrot.slane %v137, 2
  %v139 = vadd.f32 %v137, %v138
  %v140 = vrot.slane %v139, 1
  %v141 = vadd.f32 %v139, %v140
  %v142 = vmul.f32 %v127, 0.05
  %v143 = vmul.f32 %v141, 0.05
  %v144 = vmul.f32 %v142, %v142
  %v145 = vsub.f32 %v143, %v144
  %v146 = vmax.f32 %v145, 0.0
  %v147 = vld [vmem:[%s2] sm:$0x1]
  %v148 = vadd.f32 %v146, 1e-05
  %v149 = vrsqrt.pop %v148
  %v150 = vmul.f32 %v147, %v149
  %v151 = vld [vmem:[%s3] sm:$0x1]
  %v152 = vmul.f32 %v142, %v150
  %v153 = vsub.f32 %v151, %v152
  %v155 = vlaneseq
  %v156 = vshrl.u32 %v155, 7
  %v157 = vsub.s32 0, %v156
  %v158 = vrot.slane %v150, %v157
  %v160 = vmul.f32 %v102, %v158
  %v161 = vmul.f32 %v107, %v158
  %v162 = vmul.f32 %v112, %v158
  %v164 = vlaneseq
  %v165 = vshrl.u32 %v164, 7
  %v166 = vsub.s32 0, %v165
  %v167 = vrot.slane %v153, %v166
  %v169 = vadd.f32 %v160, %v167
  %v170 = vadd.f32 %v161, %v167
  %v171 = vadd.f32 %v162, %v167
  %v172 = vmax.f32 %v169, 0.0
  %v173 = vmax.f32 %v170, 0.0
  %v174 = vmax.f32 %v171, 0.0
  %175 = vst.msk [vmem:[%s4] sm:$0xff] %vm115, %v172
  %176 = vst.msk [vmem:[%s4 + $0x8] sm:$0xff] %vm115, %v173
  %177 = vst.msk [vmem:[%s4 + $0x10] sm:$0xf] %vm119, %v174
  // Predicated region
  $region18: #{tpu_custom_call.1} parent=0 // pred_check
    _
  $region19: #{tpu_custom_call.1} parent=0 // pred_check_branch
    %179 = sbr.rel (0) target = $region21
  $region20: #{tpu_custom_call.1} parent=0 // pred_region
    _
  $region21: #{tpu_custom_call.1} parent=0 // pred_fallthru
    _
  // Predicated region
  $region22: #{tpu_custom_call.1} parent=0 // pred_check
    _
  $region23: #{tpu_custom_call.1} parent=0 // pred_check_branch
    %181 = sbr.rel (0) target = $region25
  $region24: #{tpu_custom_call.1} parent=0 // pred_region
    _
  $region25: #{tpu_custom_call.1} parent=0 // pred_fallthru
    _

</llo_original>
